<compile_context>
chip_gen: v7x
topology: tpu7x:2x2x1
jax: 0.10.0
libtpu: 0.0.40
codegen_flags: <defaults>
</compile_context>

<pallas_src>
import math

import jax
import jax.numpy as jnp
from jax.experimental import pallas as pl
from jax.experimental.pallas import tpu as pltpu


# ----------------------------------------------------------------------------
# Primary path: zero-VMEM HBM -> HBM DMA copy.
# ----------------------------------------------------------------------------
def _dma_copy(x2d: jax.Array) -> jax.Array:
    B, F = x2d.shape
    n_chunks = 2 if (B >= 2 and B % 2 == 0) else 1
    cb = B // n_chunks

    def kernel(x_ref, o_ref, sem):
        i = pl.program_id(0)
        src = x_ref.at[pl.ds(i * cb, cb), :]
        dst = o_ref.at[pl.ds(i * cb, cb), :]
        cp = pltpu.make_async_copy(src, dst, sem)
        cp.start()
        cp.wait()

    nbytes = B * F * jnp.dtype(x2d.dtype).itemsize
    return pl.pallas_call(
        kernel,
        out_shape=jax.ShapeDtypeStruct((B, F), x2d.dtype),
        grid=(n_chunks,),
        in_specs=[pl.BlockSpec(memory_space=pl.ANY)],
        out_specs=pl.BlockSpec(memory_space=pl.ANY),
        scratch_shapes=[pltpu.SemaphoreType.DMA],
        compiler_params=pltpu.CompilerParams(
            dimension_semantics=("parallel",),
        ),
        cost_estimate=pl.CostEstimate(
            flops=0, transcendentals=0, bytes_accessed=2 * nbytes
        ),
    )(x2d)


# ----------------------------------------------------------------------------
# Fallback path: lane-dense tiled VMEM streaming copy.
# ----------------------------------------------------------------------------
def _copy_kernel(x_ref, o_ref):
    o_ref[...] = x_ref[...]


def _sublane_pack(dtype) -> int:
    itemsize = jnp.dtype(dtype).itemsize
    return 8 * max(1, 4 // itemsize)


def _tile_budget_bytes():
    """Per-generation (tile_budget, vmem_limit_bytes or None)."""
    try:
        kind = jax.devices()[0].device_kind.lower()
    except Exception:  # pragma: no cover
        kind = ""
    if "v5" in kind:           # v5e: 16 MiB scoped VMEM; 2 MiB tiles are plenty.
        return 2 * 1024 * 1024, None
    if "v6" in kind:           # v6e: lots of VMEM headroom; bigger tiles.
        return 6 * 1024 * 1024, 64 << 20
    if "v7" in kind or "7x" in kind:   # v7x: only 64 MiB physical VMEM.
        return 4 * 1024 * 1024, 40 << 20
    return 2 * 1024 * 1024, None


def _lane_dense_2d(N: int, dtype):
    """Factor N elements into (rows, cols) with cols a multiple of 128,
    preferring cols near 1024 and rows >= the sublane pack.  None if N is not
    divisible by 128."""
    if N % 128 != 0:
        return None
    M = N // 128
    divs = set()
    d = 1
    while d * d <= M:
        if M % d == 0:
            divs.add(d)
            divs.add(M // d)
        d += 1
    pack = _sublane_pack(dtype)
    target_k = 1024 // 128
    best = None
    for k in sorted(divs):
        cols = 128 * k
        rows = N // cols
        score = (rows >= pack, -abs(k - target_k))
        if best is None or score > best[0]:
            best = (score, rows, cols)
    return best[1], best[2]


def _pick_tiles(R: int, C: int, dtype, budget_bytes: int):
    """(tr, tc) with tr | R and tc | C; tr a multiple of the sublane pack and
    tc a multiple of 128 where divisibility allows, grown toward the budget."""
    itemsize = jnp.dtype(dtype).itemsize
    pack = _sublane_pack(dtype)

    if C % 128 == 0:
        max_c = max(128, (budget_bytes // (itemsize * pack)) // 128 * 128)
        if C <= max_c:
            tc = C
        else:
            tc = 128
            for k in range(max_c // 128, 0, -1):
                if C % (k * 128) == 0:
                    tc = k * 128
                    break
    else:
        tc = C  # full last dim is always a legal block

    if R % pack == 0:
        tr = pack
        max_r = max(pack, budget_bytes // (itemsize * tc))
        k = max_r // pack
        while k > 1:
            cand = k * pack
            if R % cand == 0:
                tr = cand
                break
            k -= 1
    else:
        tr = R  # full second-to-last dim is always a legal block
    return tr, tc


def _tiled_copy(x2d: jax.Array) -> jax.Array:
    B, F = x2d.shape
    N = B * F
    budget, vmem_limit = _tile_budget_bytes()

    shape2 = _lane_dense_2d(N, x2d.dtype)
    if shape2 is None:
        shape2 = (B, F)
    xw = jnp.reshape(x2d, shape2)  # free metadata reshape (same linear order)

    R, C = shape2
    tr, tc = _pick_tiles(R, C, x2d.dtype, budget)
    grid = (R // tr, C // tc)

    params = dict(dimension_semantics=("parallel", "parallel"))
    if vmem_limit is not None:
        params["vmem_limit_bytes"] = vmem_limit

    nbytes = N * jnp.dtype(x2d.dtype).itemsize
    out = pl.pallas_call(
        _copy_kernel,
        out_shape=jax.ShapeDtypeStruct((R, C), x2d.dtype),
        grid=grid,
        in_specs=[pl.BlockSpec((tr, tc), lambda i, j: (i, j))],
        out_specs=pl.BlockSpec((tr, tc), lambda i, j: (i, j)),
        compiler_params=pltpu.CompilerParams(**params),
        cost_estimate=pl.CostEstimate(
            flops=0, transcendentals=0, bytes_accessed=2 * nbytes
        ),
    )(xw)
    return jnp.reshape(out, (B, F))


# ----------------------------------------------------------------------------
# Public wrapper: torch `x.view(x.size(0), -1)`
# ----------------------------------------------------------------------------
def flatten(x: jax.Array) -> jax.Array:
    assert x.ndim >= 1, "expect (B, ...) input"
    B = x.shape[0]
    flat = math.prod(x.shape[1:]) if x.ndim > 1 else 1

    # Free metadata reshape (== torch .view on a contiguous row-major tensor).
    x2d = jnp.reshape(x, (B, flat))

    try:
        return _dma_copy(x2d)
    except Exception:
        # Fallback if the direct HBM->HBM DMA path fails to lower here.
        return _tiled_copy(x2d)


if __name__ == "__main__":
    key = jax.random.PRNGKey(0)

    # Small NCHW input consistent with a conv-encoder feature map.
    x = jax.random.normal(key, (2, 4, 16, 16), dtype=jnp.float32)
    out = flatten(x)
    jax.block_until_ready(out)

    ref = jnp.reshape(x, (x.shape[0], -1))
    assert out.shape == (2, 4 * 16 * 16), out.shape
    assert out.dtype == x.dtype
    assert jnp.array_equal(out, ref), "mismatch vs. reference reshape"

    # Non-128-divisible flat dim (flat = 105), even batch -> 2-chunk DMA path.
    x2 = jax.random.normal(jax.random.PRNGKey(0), (8, 3, 5, 7), dtype=jnp.float32)
    out2 = flatten(x2)
    jax.block_until_ready(out2)
    assert jnp.array_equal(out2, jnp.reshape(x2, (8, -1)))

    # Odd batch -> single-chunk DMA path, bf16 dtype.
    x3 = jax.random.normal(jax.random.PRNGKey(0), (3, 4, 8), dtype=jnp.bfloat16)
    out3 = flatten(x3)
    jax.block_until_ready(out3)
    assert jnp.array_equal(out3, jnp.reshape(x3, (3, -1)))

    print("KERNEL_OK")
</pallas_src>

<mosaic_0001>
module attributes {stable_mosaic.version = 11 : i64} {
  func.func @kernel(%arg0: i32, %arg1: memref<2x1024xf32, #tpu.memory_space<any>>, %arg2: memref<2x1024xf32, #tpu.memory_space<any>>, %arg3: memref<!tpu.dma_semaphore, #tpu.memory_space<semaphore_mem>>) attributes {dimension_semantics = [#tpu.dimension_semantics<parallel>], iteration_bounds = array<i64: 2>, scalar_prefetch = 0 : i64, scratch_operands = 1 : i64, tpu.core_type = #tpu.core_type<tc>, window_params = [{}, {}]} {
    %c1_i32 = arith.constant 1 : i32
    %0 = arith.muli %arg0, %c1_i32 : i32
    %c1_i32_0 = arith.constant 1 : i32
    %1 = arith.muli %arg0, %c1_i32_0 : i32
    %c0_i32 = arith.constant 0 : i32
    %2 = tpu.memref_slice %arg1[%0, %c0_i32] : memref<2x1024xf32, #tpu.memory_space<any>> -> memref<1x1024xf32, #tpu.memory_space<any>>
    %c0_i32_1 = arith.constant 0 : i32
    %3 = tpu.memref_slice %arg2[%1, %c0_i32_1] : memref<2x1024xf32, #tpu.memory_space<any>> -> memref<1x1024xf32, #tpu.memory_space<any>>
    tpu.enqueue_dma source(%2 : memref<1x1024xf32, #tpu.memory_space<any>>) target(%3 : memref<1x1024xf32, #tpu.memory_space<any>>) target_semaphore(%arg3 : memref<!tpu.dma_semaphore, #tpu.memory_space<semaphore_mem>>)
    %c0_i32_2 = arith.constant 0 : i32
    %4 = tpu.memref_slice %arg1[%0, %c0_i32_2] : memref<2x1024xf32, #tpu.memory_space<any>> -> memref<1x1024xf32, #tpu.memory_space<any>>
    %c0_i32_3 = arith.constant 0 : i32
    %5 = tpu.memref_slice %arg2[%1, %c0_i32_3] : memref<2x1024xf32, #tpu.memory_space<any>> -> memref<1x1024xf32, #tpu.memory_space<any>>
    tpu.wait_dma2 semaphore(%arg3 : memref<!tpu.dma_semaphore, #tpu.memory_space<semaphore_mem>>) src(%4 : memref<1x1024xf32, #tpu.memory_space<any>>) dst(%5 : memref<1x1024xf32, #tpu.memory_space<any>>)
    return
  }
}

module attributes {stable_mosaic.version = 11 : i64} {
  func.func @_copy_kernel(%arg0: i32, %arg1: i32, %arg2: memref<8x256xf32, #tpu.memory_space<vmem>>, %arg3: memref<8x256xf32, #tpu.memory_space<vmem>>) attributes {dimension_semantics = [#tpu.dimension_semantics<parallel>, #tpu.dimension_semantics<parallel>], iteration_bounds = array<i64: 1, 1>, scalar_prefetch = 0 : i64, scratch_operands = 0 : i64, tpu.core_type = #tpu.core_type<tc>, window_params = [{transform_indices = @transform_0, window_bounds = array<i64: 8, 256>}, {transform_indices = @transform_1, window_bounds = array<i64: 8, 256>}]} {
    %c0 = arith.constant 0 : index
    %c0_0 = arith.constant 0 : index
    %0 = vector.load %arg2[%c0, %c0_0] : memref<8x256xf32, #tpu.memory_space<vmem>>, vector<8x256xf32>
    %c0_1 = arith.constant 0 : index
    %c0_2 = arith.constant 0 : index
    %1 = vector.load %arg3[%c0_1, %c0_2] : memref<8x256xf32, #tpu.memory_space<vmem>>, vector<8x256xf32>
    tpu.vector_store %arg3[%c0_1, %c0_2], %0 {strides = array<i32>} : memref<8x256xf32, #tpu.memory_space<vmem>>, vector<8x256xf32>,
    return
  }
  func.func @transform_0(%arg0: i32, %arg1: i32) -> (i32, i32) {
    %c0_i32 = arith.constant 0 : i32
    return %arg0, %arg1 : i32, i32
  }
  func.func @transform_1(%arg0: i32, %arg1: i32) -> (i32, i32) {
    %c0_i32 = arith.constant 0 : i32
    return %arg0, %arg1 : i32, i32
  }
}

</mosaic_0001>

<llo_original>
// kernel: tpu_custom_call.1
$region0: #{tpu_custom_call.1}
  #allocation0 [shape = 'u32[]', space=smem, size = 0x4, offset = 0x4, fixed_abs, tag = 'smem constant byte address 0x4 - core index']
  #allocation1 [shape = 'u32[144,128]{1,0:T(1,128)}', space=vmem, size = 0x12000, scoped, tag = 'internal scratch']
  #allocation2 [shape = 's32[1]{0}', space=sflag, size = 0x4, scoped, tag = 'scratch operand']
  #allocation3 [shape = 's32[]', space=sflag, size = 0x4, offset = 0, fixed_abs, tag = 'sflag constant byte address 0x0 - dummy sync flag']
  %s0 = inlined_call_operand.hbm [shape: f32[2,1024], index: 0, kind: input, shape index: {}]
  %s1 = inlined_call_operand.hbm [shape: f32[2,1024], index: 1, kind: output, shape index: {}]
  %s2 = sld [smem:[#allocation0]]
  $region9: #{tpu_custom_call.1} parent=0
    _
  %s4 = ssub.s32 1, %s2
  %s5 = scalar_select 0, %s4, %s2
  loop: start=0, step=1, limit=2
  $region2: #{tpu_custom_call.1} parent=0 // loop_pre_header
    _
  $region3: #{tpu_custom_call.1} parent=0 // loop_header
    %s7 = sphi 0, %s11
    %p8 = scmp.ge.s32.totalorder %s7, 2
  $region4: #{tpu_custom_call.1} parent=0 // loop_header_branch
    %10 = sbr.rel (%p8) target = $region8
  $region5: #{tpu_custom_call.1} parent=0 // loop_body
    #allocation4 [shape = 'u32[3]{0}', space=smem, size = 0xc, scoped, tag = 'DMA stride descriptor']
    %s12 = sadd.s32 %s7, 1
    %s13 = sshrl.u32 %s7, 1
    %s14 = sand.u32 %s7, 1
    %s15 = smul.u32 %s13, 16
    %s16 = sadd.s32 %s14, %s15
    %s17 = smul.addr %s16, 16
    %s18 = scalar_lea.hbm %s0, %s17
    %s19 = smul.addr %s16, 16
    %s20 = scalar_lea.hbm %s1, %s19
    %s22 = sshll.u32 1, 14
    %s23 = sxor.u32 4294967295, %s22
    %s26 = sshll.u32 3, 24
    %s27 = sxor.u32 4294967295, %s26
    %s28 = sand.u32 0, %s27
    %s30 = sor.u32 %s28, 0
    %33 = sst [smem:[#allocation4]] 32
    %s34 = scalar_lea.smem [#allocation4], 1
    %35 = sst [smem:[%s34]] 32
    %s36 = scalar_lea.smem [#allocation4], 2
    %37 = sst [smem:[%s36]] 1
    %39 = dma.general %s18, 128, %s20, [#allocation2], [#allocation3], [#allocation4], %s30, 0
    %s40 = smul.u32 1, 8
    %s41 = sshll.u32 %s40, 4
    %42 = dma.done [#allocation2], %s41
  $region6: #{tpu_custom_call.1} parent=0 // loop_footer
    %s11 = sadd.s32 1, %s7
  $region7: #{tpu_custom_call.1} parent=0 // loop_footer_branch
    %6 = sbr.rel target = $region3
  $region8: #{tpu_custom_call.1} parent=0 // loop_exit
    _
  %43 = vsyncmov [#allocation2]
  %s44 = vpop.sfrf %43
  %p45 = scmp.eq.s32.totalorder %s44, 0
  %p46 = pneg %p45
  %48 = shalt.err (%p46)

// kernel: tpu_custom_call.1
$region0: #{tpu_custom_call.1}
  #allocation0 [shape = 'u32[]', space=smem, size = 0x4, offset = 0x4, fixed_abs, tag = 'smem constant byte address 0x4 - core index']
  #allocation1 [shape = 'u32[144,128]{1,0:T(1,128)}', space=vmem, size = 0x12000, scoped, tag = 'internal scratch']
  %s0 = inlined_call_operand.hbm [shape: f32[8,256], index: 0, kind: input, shape index: {}]
  %s1 = inlined_call_operand.hbm [shape: f32[8,256], index: 1, kind: output, shape index: {}]
  %s2 = sld [smem:[#allocation0]]
  $region18: #{tpu_custom_call.1} parent=0
    _
  %s4 = ssub.s32 1, %s2
  %s5 = scalar_select 0, %s4, %s2
  $region1: #{tpu_custom_call.1} parent=0
    #allocation2 [shape = 'u8[8192]{0}', space=vmem, size = 0x2000, scoped, tag = 'input window, operand 0, single buffered']
    #allocation3 [shape = 's32[1]{0}', space=sflag, size = 0x4, scoped, tag = 'scoped memory for tpu_custom_call.1']
    #allocation4 [shape = 's32[1]{0}', space=sflag, size = 0x4, scoped, tag = 'scoped memory for tpu_custom_call.1']
    #allocation5 [shape = 'u8[8192]{0}', space=vmem, size = 0x2000, scoped, tag = 'output window, operand 0, single buffered']
    %6 = vsyncpa [#allocation3], 0
    %7 = vsyncpa [#allocation4], 0
    // Predicated region
    $region2: #{tpu_custom_call.1} parent=1 // pred_check
      _
    $region3: #{tpu_custom_call.1} parent=1 // pred_check_branch
      %9 = sbr.rel (0) target = $region5
    $region4: #{tpu_custom_call.1} parent=1 // pred_region
      %s11 = ssub.s32 256, 256
      %12 = vsyncadd [#allocation3], %s11
      %s14 = sshll.u32 [#allocation2], 4
      %s15 = int_to_ptr.vmem [resolvable:$true] %s14
      %17 = dma.hbm_to_vmem [thread:$0]  %s0, 256, %s15, [#allocation3]
    $region5: #{tpu_custom_call.1} parent=1 // pred_fallthru
      _
    // Predicated region
    $region6: #{tpu_custom_call.1} parent=1 // pred_check
      _
    $region7: #{tpu_custom_call.1} parent=1 // pred_check_branch
      %19 = sbr.rel (0) target = $region9
    $region8: #{tpu_custom_call.1} parent=1 // pred_region
      %20 = dma.done [#allocation3], 256
    $region9: #{tpu_custom_call.1} parent=1 // pred_fallthru
      _
    %v21 = vld [vmem:[#allocation2] sm:$0xff]
    %v22 = vld [vmem:[#allocation2 + $0x8] sm:$0xff]
    %23 = vst [vmem:[#allocation5] sm:$0xff] %v21
    %24 = vst [vmem:[#allocation5 + $0x8] sm:$0xff] %v22
    // Predicated region
    $region10: #{tpu_custom_call.1} parent=1 // pred_check
      _
    $region11: #{tpu_custom_call.1} parent=1 // pred_check_branch
      %26 = sbr.rel (0) target = $region13
    $region12: #{tpu_custom_call.1} parent=1 // pred_region
      %s28 = ssub.s32 256, 256
      %29 = vsyncadd [#allocation4], %s28
      %s31 = sshll.u32 [#allocation5], 4
      %s32 = int_to_ptr.vmem [resolvable:$true] %s31
      %34 = dma.vmem_to_hbm [thread:$0]  %s32, 256, %s1, [#allocation4]
    $region13: #{tpu_custom_call.1} parent=1 // pred_fallthru
      _
    // Predicated region
    $region14: #{tpu_custom_call.1} parent=1 // pred_check
      _
    $region15: #{tpu_custom_call.1} parent=1 // pred_check_branch
      %36 = sbr.rel (0) target = $region17
    $region16: #{tpu_custom_call.1} parent=1 // pred_region
      %37 = dma.done [#allocation4], 256
    $region17: #{tpu_custom_call.1} parent=1 // pred_fallthru
      _
    %38 = vsyncpa [#allocation3], 1
    %39 = vsyncpa [#allocation4], 1

</llo_original>
